<compile_context>
chip_gen: v7x
topology: tpu7x:2x2x1
jax: 0.10.0
libtpu: 0.0.40
codegen_flags: <defaults>
</compile_context>

<pallas_src>
import math

import jax
import jax.numpy as jnp
from jax.experimental import pallas as pl
from jax.experimental.pallas import tpu as pltpu


def _correct_kernel(cas_ref, wmf_ref, out_ref):
    """out_tile = sigmoid(cas_tile @ (weight @ main_feature)) — one MXU matmul."""
    logits = jnp.dot(
        cas_ref[...], wmf_ref[...], preferred_element_type=jnp.float32
    )
    # Numerically-stable sigmoid (identical to jax.nn.sigmoid).
    e = jnp.exp(-jnp.abs(logits))           # EUP
    pos = 1.0 / (1.0 + e)                   # sigmoid(|x|)
    sig = jnp.where(logits >= 0.0, pos, 1.0 - pos)
    out_ref[...] = sig.astype(out_ref.dtype)


def correct_forward(cas, weight, main_feature, *, row_tile=1024):
    B, cas_len = cas.shape
    cas_len2, clas_len = weight.shape
    clas_len2, D = main_feature.shape
    assert cas_len == cas_len2 and clas_len == clas_len2

    # Batch-independent pre-product (matmul associativity): (cas_len, D).
    # Done once in the wrapper at highest precision; amortizes to ~zero.
    wmf = jnp.dot(
        weight,
        main_feature,
        preferred_element_type=jnp.float32,
        precision=jax.lax.Precision.HIGHEST,
    )

    # Balanced row tiling: round B up to a sublane multiple, split into the
    # fewest tiles of size <= row_tile, then size tiles evenly (multiple of 8).
    # Padding overhead is at most (n_tiles * 8 - 1) rows, never a whole tile.
    b8 = ((B + 7) // 8) * 8
    n_tiles = max(1, -(-b8 // row_tile))
    tm = ((-(-b8 // n_tiles) + 7) // 8) * 8
    padded_b = n_tiles * tm
    cas_p = jnp.pad(cas, ((0, padded_b - B), (0, 0))) if padded_b != B else cas

    out = pl.pallas_call(
        _correct_kernel,
        out_shape=jax.ShapeDtypeStruct((padded_b, D), jnp.float32),
        grid_spec=pltpu.PrefetchScalarGridSpec(
            num_scalar_prefetch=0,
            grid=(n_tiles,),
            in_specs=[
                # Streamed row tiles of cas (double-buffered by BlockSpec).
                pl.BlockSpec((tm, cas_len), lambda i: (i, 0)),
                # Fused weight matrix: resident in VMEM across all grid steps.
                pl.BlockSpec((cas_len, D), lambda i: (0, 0)),
            ],
            out_specs=pl.BlockSpec((tm, D), lambda i: (i, 0)),
        ),
        compiler_params=pltpu.CompilerParams(
            # Independent row tiles -> shard across both TCs on v7x.
            dimension_semantics=("parallel",),
        ),
    )(cas_p, wmf)

    # TODO(synk): if D stays tiny while B grows huge, pad D to 128 lanes for
    # unmasked vst stores — trades 4x output HBM bytes for lane-dense writes.
    return out[:B] if padded_b != B else out


if __name__ == "__main__":
    # Module hyper-parameters (small, consistent with the forward pass).
    cas_len = 32
    clas_len = 16
    B = 8      # batch rows of `cas`
    D = 32     # feature dim of `main_feature`

    key = jax.random.PRNGKey(0)
    k_w, k_cas, k_mf = jax.random.split(key, 3)

    # Parameter init mirroring reset_parameters(): U(-stdv, stdv), stdv = 1/sqrt(clas_len)
    stdv = 1.0 / math.sqrt(clas_len)
    weight = jax.random.uniform(
        k_w, (cas_len, clas_len), dtype=jnp.float32, minval=-stdv, maxval=stdv
    )
    cas = jax.random.normal(k_cas, (B, cas_len), dtype=jnp.float32)
    main_feature = jax.random.normal(k_mf, (clas_len, D), dtype=jnp.float32)

    out = jax.block_until_ready(correct_forward(cas, weight, main_feature))

    # Correctness check against a pure-JAX reference of the PyTorch forward.
    ref = jax.nn.sigmoid(cas @ weight @ main_feature)
    assert out.shape == (B, D) and out.dtype == jnp.float32
    assert jnp.max(jnp.abs(out - ref)) < 1e-5

    # Second check: multi-tile grid + balanced row padding path
    # (B not a multiple of 8 nor of the row tile).
    B2 = 2051
    cas2 = jax.random.normal(jax.random.PRNGKey(1), (B2, cas_len), dtype=jnp.float32)
    out2 = jax.block_until_ready(
        correct_forward(cas2, weight, main_feature, row_tile=512)
    )
    ref2 = jax.nn.sigmoid(cas2 @ weight @ main_feature)
    assert out2.shape == (B2, D)
    assert jnp.max(jnp.abs(out2 - ref2)) < 1e-5

    print("KERNEL_OK")
</pallas_src>

<mosaic_0001>
module attributes {stable_mosaic.version = 11 : i64} {
  func.func @_correct_kernel(%arg0: i32, %arg1: memref<8x32xf32, #tpu.memory_space<vmem>>, %arg2: memref<32x32xf32, #tpu.memory_space<vmem>>, %arg3: memref<8x32xf32, #tpu.memory_space<vmem>>) attributes {dimension_semantics = [#tpu.dimension_semantics<parallel>], iteration_bounds = array<i64: 1>, scalar_prefetch = 0 : i64, scratch_operands = 0 : i64, tpu.core_type = #tpu.core_type<tc>, window_params = [{transform_indices = @transform_0, window_bounds = array<i64: 8, 32>}, {pipeline_mode = #tpu.pipeline_mode<synchronous>, transform_indices = @transform_1, window_bounds = array<i64: 32, 32>}, {transform_indices = @transform_2, window_bounds = array<i64: 8, 32>}]} {
    %c0 = arith.constant 0 : index
    %c0_0 = arith.constant 0 : index
    %0 = vector.load %arg1[%c0, %c0_0] : memref<8x32xf32, #tpu.memory_space<vmem>>, vector<8x32xf32>
    %c0_1 = arith.constant 0 : index
    %c0_2 = arith.constant 0 : index
    %1 = vector.load %arg2[%c0_1, %c0_2] : memref<32x32xf32, #tpu.memory_space<vmem>>, vector<32x32xf32>
    %cst = arith.constant dense<0.000000e+00> : vector<8x32xf32>
    %2 = tpu.matmul %0, %1, %cst {dimension_numbers = #tpu.dot_dimension_numbers<[1], [0], [0], [1], [0, 0, 1, 1], [], []>} : vector<8x32xf32>, vector<32x32xf32>, vector<8x32xf32> -> vector<8x32xf32>
    %3 = math.absf %2 : vector<8x32xf32>
    %cst_3 = arith.constant 0.000000e+00 : f32
    %4 = vector.broadcast %cst_3 : f32 to vector<8x32xf32>
    %5 = arith.subf %4, %3 : vector<8x32xf32>
    %6 = math.exp %5 : vector<8x32xf32>
    %cst_4 = arith.constant 1.000000e+00 : f32
    %7 = vector.broadcast %cst_4 : f32 to vector<8x32xf32>
    %8 = arith.addf %7, %6 : vector<8x32xf32>
    %cst_5 = arith.constant 1.000000e+00 : f32
    %9 = vector.broadcast %cst_5 : f32 to vector<8x32xf32>
    %10 = arith.divf %9, %8 : vector<8x32xf32>
    %cst_6 = arith.constant 0.000000e+00 : f32
    %11 = vector.broadcast %cst_6 : f32 to vector<8x32xf32>
    %12 = arith.cmpf oge, %2, %11 : vector<8x32xf32>
    %cst_7 = arith.constant 1.000000e+00 : f32
    %13 = vector.broadcast %cst_7 : f32 to vector<8x32xf32>
    %14 = arith.subf %13, %10 : vector<8x32xf32>
    %15 = arith.select %12, %10, %14 : vector<8x32xi1>, vector<8x32xf32>
    %c0_8 = arith.constant 0 : index
    %c0_9 = arith.constant 0 : index
    %16 = vector.load %arg3[%c0_8, %c0_9] : memref<8x32xf32, #tpu.memory_space<vmem>>, vector<8x32xf32>
    tpu.vector_store %arg3[%c0_8, %c0_9], %15 {strides = array<i32>} : memref<8x32xf32, #tpu.memory_space<vmem>>, vector<8x32xf32>,
    return
  }
  func.func @transform_0(%arg0: i32) -> (i32, i32) {
    %c0_i32 = arith.constant 0 : i32
    %c0_i32_0 = arith.constant 0 : i32
    return %arg0, %c0_i32 : i32, i32
  }
  func.func @transform_1(%arg0: i32) -> (i32, i32) {
    %c0_i32 = arith.constant 0 : i32
    %c0_i32_0 = arith.constant 0 : i32
    %c0_i32_1 = arith.constant 0 : i32
    return %c0_i32, %c0_i32_0 : i32, i32
  }
  func.func @transform_2(%arg0: i32) -> (i32, i32) {
    %c0_i32 = arith.constant 0 : i32
    %c0_i32_0 = arith.constant 0 : i32
    return %arg0, %c0_i32 : i32, i32
  }
}

</mosaic_0001>

<llo_original>
// kernel: tpu_custom_call.1
$region0: #{tpu_custom_call.1}
  #allocation0 [shape = 'u32[]', space=smem, size = 0x4, offset = 0x4, fixed_abs, tag = 'smem constant byte address 0x4 - core index']
  #allocation1 [shape = 'u32[144,128]{1,0:T(1,128)}', space=vmem, size = 0x12000, scoped, tag = 'internal scratch']
  %s0 = inlined_call_operand.hbm [shape: f32[8,32], index: 0, kind: input, shape index: {}]
  %s1 = inlined_call_operand.hbm [shape: f32[32,32], index: 1, kind: input, shape index: {}]
  %s2 = inlined_call_operand.hbm [shape: f32[8,32], index: 2, kind: output, shape index: {}]
  %s3 = sld [smem:[#allocation0]]
  $region26: #{tpu_custom_call.1} parent=0
    _
  %s5 = ssub.s32 1, %s3
  %s6 = scalar_select 0, %s5, %s3
  $region1: #{tpu_custom_call.1} parent=0
    #allocation2 [shape = 'u8[4096]{0}', space=vmem, size = 0x1000, scoped, tag = 'input window, operand 0, single buffered']
    #allocation3 [shape = 's32[1]{0}', space=sflag, size = 0x4, scoped, tag = 'scoped memory for tpu_custom_call.1']
    #allocation4 [shape = 's32[1]{0}', space=sflag, size = 0x4, scoped, tag = 'scoped memory for tpu_custom_call.1']
    #allocation5 [shape = 'u8[16384]{0}', space=vmem, size = 0x4000, scoped, tag = 'input window, operand 1, single buffered']
    #allocation6 [shape = 's32[1]{0}', space=sflag, size = 0x4, scoped, tag = 'scoped memory for tpu_custom_call.1']
    #allocation7 [shape = 'u8[4096]{0}', space=vmem, size = 0x1000, scoped, tag = 'output window, operand 0, single buffered']
    %7 = vsyncpa [#allocation3], 0
    %8 = vsyncpa [#allocation6], 0
    %9 = vsyncpa [#allocation4], 0
    // Predicated region
    $region2: #{tpu_custom_call.1} parent=1 // pred_check
      _
    $region3: #{tpu_custom_call.1} parent=1 // pred_check_branch
      %11 = sbr.rel (0) target = $region5
    $region4: #{tpu_custom_call.1} parent=1 // pred_region
      %s13 = ssub.s32 128, 128
      %14 = vsyncadd [#allocation3], %s13
      %s16 = sshll.u32 [#allocation2], 4
      %s17 = int_to_ptr.vmem [resolvable:$true] %s16
      %19 = dma.hbm_to_vmem [thread:$0]  %s0, 128, %s17, [#allocation3]
    $region5: #{tpu_custom_call.1} parent=1 // pred_fallthru
      _
    // Predicated region
    $region6: #{tpu_custom_call.1} parent=1 // pred_check
      _
    $region7: #{tpu_custom_call.1} parent=1 // pred_check_branch
      %21 = sbr.rel (0) target = $region9
    $region8: #{tpu_custom_call.1} parent=1 // pred_region
      %s23 = ssub.s32 512, 512
      %24 = vsyncadd [#allocation6], %s23
      %s25 = sshll.u32 [#allocation5], 4
      %s26 = int_to_ptr.vmem [resolvable:$true] %s25
      %31 = dma.hbm_to_vmem [thread:$0]  %s1, 512, %s26, [#allocation6], 128, 128, 8
    $region9: #{tpu_custom_call.1} parent=1 // pred_fallthru
      _
    // Predicated region
    $region10: #{tpu_custom_call.1} parent=1 // pred_check
      _
    $region11: #{tpu_custom_call.1} parent=1 // pred_check_branch
      %33 = sbr.rel (0) target = $region13
    $region12: #{tpu_custom_call.1} parent=1 // pred_region
      %34 = dma.done [#allocation3], 128
    $region13: #{tpu_custom_call.1} parent=1 // pred_fallthru
      _
    // Predicated region
    $region14: #{tpu_custom_call.1} parent=1 // pred_check
      _
    $region15: #{tpu_custom_call.1} parent=1 // pred_check_branch
      %36 = sbr.rel (0) target = $region17
    $region16: #{tpu_custom_call.1} parent=1 // pred_region
      %37 = dma.done [#allocation6], 512
    $region17: #{tpu_custom_call.1} parent=1 // pred_fallthru
      _
    %v38 = vld [vmem:[#allocation2] sm:$0xff]
    %v39 = vld [vmem:[#allocation5] sm:$0xff]
    %v40 = vld [vmem:[#allocation5 + $0x8] sm:$0xff]
    %v41 = vld [vmem:[#allocation5 + $0x10] sm:$0xff]
    %v42 = vld [vmem:[#allocation5 + $0x18] sm:$0xff]
    %vm43 = vcmask 261120
    %v45 = vsel %vm43, %v38, 0
    %47 = vmatprep.subr.mxu0 0.0
    %48 = vmatpush1.msra.mxu0 %v39
    %49 = vmatprep.subr.mxu0 0.0
    %50 = vmatpush1.msra.mxu0 %v40
    %51 = vmatprep.subr.mxu0 0.0
    %52 = vmatpush1.msra.mxu0 %v41
    %53 = vmatprep.subr.mxu0 0.0
    %54 = vmatpush1.msra.mxu0 %v42
    %55 = vmatprep.subr.mxu0 0.0
    %56 = vmatpush1.msra.mxu0 0.0
    %57 = vmatprep.subr.mxu0 0.0
    %58 = vmatpush1.msra.mxu0 0.0
    %59 = vmatprep.subr.mxu0 0.0
    %60 = vmatpush1.msra.mxu0 0.0
    %61 = vmatprep.subr.mxu0 0.0
    %62 = vmatpush1.msra.mxu0 0.0
    %63 = vmatprep.subr.mxu0 0.0
    %64 = vmatpush1.msra.mxu0 0.0
    %65 = vmatprep.subr.mxu0 0.0
    %66 = vmatpush1.msra.mxu0 0.0
    %67 = vmatprep.subr.mxu0 0.0
    %68 = vmatpush1.msra.mxu0 0.0
    %69 = vmatprep.subr.mxu0 0.0
    %70 = vmatpush1.msra.mxu0 0.0
    %71 = vmatprep.subr.mxu0 0.0
    %72 = vmatpush1.msra.mxu0 0.0
    %73 = vmatprep.subr.mxu0 0.0
    %74 = vmatpush1.msra.mxu0 0.0
    %75 = vmatprep.subr.mxu0 0.0
    %76 = vmatpush1.msra.mxu0 0.0
    %77 = vmatprep.subr.mxu0 0.0
    %78 = vmatpush1.msra.mxu0 0.0
    %79 = vmatprep.subr.mxu0 0.0
    %80 = vmatpush1.msra.mxu0 0.0
    %81 = vmatprep.subr.mxu0 0.0
    %82 = vmatpush1.msra.mxu0 0.0
    %83 = vmatprep.subr.mxu0 0.0
    %84 = vmatpush1.msra.mxu0 0.0
    %85 = vmatprep.subr.mxu0 0.0
    %86 = vmatpush1.msra.mxu0 0.0
    %87 = vmatprep.subr.mxu0 0.0
    %88 = vmatpush1.msra.mxu0 0.0
    %89 = vmatprep.subr.mxu0 0.0
    %90 = vmatpush1.msra.mxu0 0.0
    %91 = vmatprep.subr.mxu0 0.0
    %92 = vmatpush1.msra.mxu0 0.0
    %93 = vmatprep.subr.mxu0 0.0
    %94 = vmatpush1.msra.mxu0 0.0
    %95 = vmatprep.subr.mxu0 0.0
    %96 = vmatpush1.msra.mxu0 0.0
    %97 = vmatprep.subr.mxu0 0.0
    %98 = vmatpush1.msra.mxu0 0.0
    %99 = vmatprep.subr.mxu0 0.0
    %100 = vmatpush1.msra.mxu0 0.0
    %101 = vmatprep.subr.mxu0 0.0
    %102 = vmatpush1.msra.mxu0 0.0
    %103 = vmatprep.subr.mxu0 0.0
    %104 = vmatpush1.msra.mxu0 0.0
    %105 = vmatprep.subr.mxu0 0.0
    %106 = vmatpush1.msra.mxu0 0.0
    %107 = vmatprep.subr.mxu0 0.0
    %108 = vmatpush1.msra.mxu0 0.0
    %109 = vmatprep.subr.mxu0 0.0
    %110 = vmatpush1.msra.mxu0 0.0
    %111 = vmatprep.mubr.f32.mxu0 0.0
    %112 = vmatmul.mubr.f32.gmra.mrb[0].mxu0 %v45
    %v113 = vpop.f32.mrb[0].mxu0
    %v114 = vadd.f32 0.0, %v113
    %v115 = vpop.f32.mrb[0].mxu0
    %116 = vdwg.mxu0
    %v117 = vand.u32 2147483647, %v114
    %v118 = vsub.f32 0.0, %v117
    %v119 = vmul.f32 %v118, 1.442695
    %v120 = vpow.pop %v119
    %v121 = vadd.f32 %v120, 1.0
    %v122 = vrcp.pop %v121
    %v123 = vmul.f32 1.0, %v122
    %vm124 = vcmp.ge.f32.partialorder %v114, 0.0
    %v125 = vsub.f32 1.0, %v123
    %v126 = vsel %vm124, %v123, %v125
    %127 = vst.msk [vmem:[#allocation7] sm:$0xff] %vm43, %v126
    // Predicated region
    $region18: #{tpu_custom_call.1} parent=1 // pred_check
      _
    $region19: #{tpu_custom_call.1} parent=1 // pred_check_branch
      %129 = sbr.rel (0) target = $region21
    $region20: #{tpu_custom_call.1} parent=1 // pred_region
      %s131 = ssub.s32 128, 128
      %132 = vsyncadd [#allocation4], %s131
      %s134 = sshll.u32 [#allocation7], 4
      %s135 = int_to_ptr.vmem [resolvable:$true] %s134
      %137 = dma.vmem_to_hbm [thread:$0]  %s135, 128, %s2, [#allocation4]
    $region21: #{tpu_custom_call.1} parent=1 // pred_fallthru
      _
    // Predicated region
    $region22: #{tpu_custom_call.1} parent=1 // pred_check
      _
    $region23: #{tpu_custom_call.1} parent=1 // pred_check_branch
      %139 = sbr.rel (0) target = $region25
    $region24: #{tpu_custom_call.1} parent=1 // pred_region
      %140 = dma.done [#allocation4], 128
    $region25: #{tpu_custom_call.1} parent=1 // pred_fallthru
      _
    %141 = vsyncpa [#allocation3], 1
    %142 = vsyncpa [#allocation6], 1
    %143 = vsyncpa [#allocation4], 1

</llo_original>
